<compile_context>
chip_gen: v7x
topology: tpu7x:2x2x1
jax: 0.10.0
libtpu: 0.0.40
codegen_flags: <defaults>
</compile_context>

<pallas_src>
import functools

import jax
import jax.numpy as jnp
from jax.experimental import pallas as pl
from jax.experimental.pallas import tpu as pltpu


# ---------------------------------------------------------------------------
# Kernels
# ---------------------------------------------------------------------------
def _se_kernel(x_ref, w1_ref, w2_ref, o_ref, *, mode, inv_n):
    """Single-pass SE: pool + FC + sigmoid + scale, one batch block per step."""
    x = x_ref[...]                                         # (Bt, C, N), native dtype

    # Squeeze: reduce the spatial (lane) axis; accumulate in f32 without
    # materializing a full-block f32 copy.
    if mode == "avg":
        pooled = jnp.sum(x, axis=-1, dtype=jnp.float32) * inv_n      # (Bt, C)
    else:  # "max"
        pooled = jnp.max(x, axis=-1).astype(jnp.float32)             # (Bt, C)

    w1 = w1_ref[...]                                       # (Cr, C), native dtype
    w2 = w2_ref[...]                                       # (C, Cr), native dtype

    # Excitation: pooled @ W1.T -> relu -> @ W2.T -> sigmoid.  dot_general
    # contracts the last dim of both operands (A @ B.T) so no weight
    # transpose is materialized; MXU consumes the native dtype, accumulates f32.
    hidden = jax.lax.dot_general(
        pooled.astype(w1.dtype), w1,
        dimension_numbers=(((1,), (1,)), ((), ())),
        preferred_element_type=jnp.float32)                # (Bt, Cr)
    hidden = jnp.maximum(hidden, 0.0)
    logits = jax.lax.dot_general(
        hidden.astype(w2.dtype), w2,
        dimension_numbers=(((1,), (1,)), ((), ())),
        preferred_element_type=jnp.float32)                # (Bt, C)
    scale = jax.nn.sigmoid(logits).astype(x.dtype)         # (Bt, C)

    # Scale in the input dtype (per-channel gate broadcast along lanes).
    o_ref[...] = x * scale[:, :, None]


def _pool_kernel(x_ref, acc_ref, *, mode, tile_n, n_valid):
    """Fallback pass 1: accumulate the global pool over spatial tiles."""
    n_idx = pl.program_id(1)
    x = x_ref[...]                                         # (Bt, C, tile_n)

    if n_valid % tile_n != 0:
        # Last spatial tile is partial: mask padded lanes with the reduction's
        # neutral element so they cannot leak into the sum/max.
        lane = jax.lax.broadcasted_iota(jnp.int32, x.shape, 2) + n_idx * tile_n
        valid = lane < n_valid
        if mode == "avg":
            x = jnp.where(valid, x, jnp.zeros_like(x))
        else:
            x = jnp.where(valid, x, jnp.full(x.shape, -jnp.inf, x.dtype))

    if mode == "avg":
        part = jnp.sum(x, axis=-1, dtype=jnp.float32)      # (Bt, C)
    else:
        part = jnp.max(x, axis=-1).astype(jnp.float32)     # (Bt, C)

    @pl.when(n_idx == 0)
    def _():
        init = 0.0 if mode == "avg" else -jnp.inf
        acc_ref[...] = jnp.full(acc_ref.shape, init, acc_ref.dtype)

    if mode == "avg":
        acc_ref[...] += part[:, :, None]
    else:
        acc_ref[...] = jnp.maximum(acc_ref[...], part[:, :, None])


def _scale_kernel(x_ref, s_ref, o_ref):
    """Fallback pass 2: apply the per-channel gate over spatial tiles."""
    o_ref[...] = x_ref[...] * s_ref[...]                   # (Bt,C,tn) * (Bt,C,1)


# ---------------------------------------------------------------------------
# Wrapper
# ---------------------------------------------------------------------------
def _vmem_capacity_bytes():
    try:
        return int(pltpu.get_tpu_info().vmem_capacity_bytes)
    except Exception:
        return 64 * 1024 * 1024   # conservative default (v7x per-core VMEM)


def se_block_forward(x, w1, w2, *, mode="avg", block_b=None, block_n=None,
                     force_two_pass=False):
    """x: (B, C, H, W); w1: (C//ratio, C); w2: (C, C//ratio) -> (B, C, H, W)."""
    assert mode in ("avg", "max")
    B, C, H, W = x.shape
    Cr = w1.shape[0]
    assert w1.shape == (Cr, C) and w2.shape == (C, Cr)
    N = H * W
    x_flat = x.reshape(B, C, N)
    itemsize = jnp.dtype(x.dtype).itemsize

    # Generation-aware budgets (v5e/v6e: 128 MiB VMEM, v7x: 64 MiB).
    cap = _vmem_capacity_bytes()
    vmem_cap = (cap * 3) // 4                 # ~48 MiB v7x, ~96 MiB v5e/v6e
    target_blk = min(8 << 20, vmem_cap // 8)  # per-block data budget (pre double-buffer)

    per_elem = C * N * itemsize               # one batch element's (C, N) slab
    w_bytes = (w1.size * jnp.dtype(w1.dtype).itemsize
               + w2.size * jnp.dtype(w2.dtype).itemsize)

    use_two_pass = force_two_pass or per_elem > target_blk

    if not use_two_pass:
        # -------- single pass: one read + one write of x --------
        if block_b is None:
            bb = max(1, target_blk // max(per_elem, 1))
            bb = min(bb, B)
            if B >= 2:                         # keep grid_b >= 2 (both v7x TCs busy)
                bb = min(bb, pl.cdiv(B, 2))
        else:
            bb = min(block_b, B)
        grid_b = pl.cdiv(B, bb)

        blk_bytes = bb * per_elem
        vmem_limit = int(min(vmem_cap,
                             max(32 << 20, 4 * blk_bytes + 4 * w_bytes + (4 << 20))))

        cost = pl.CostEstimate(
            flops=int(B * (2 * C * N + 4 * C * Cr)),
            transcendentals=int(B * C),
            bytes_accessed=int(2 * B * C * N * itemsize + w_bytes))

        out_flat = pl.pallas_call(
            functools.partial(_se_kernel, mode=mode, inv_n=1.0 / N),
            out_shape=jax.ShapeDtypeStruct((B, C, N), x.dtype),
            grid_spec=pltpu.PrefetchScalarGridSpec(
                num_scalar_prefetch=0,
                grid=(grid_b,),
                in_specs=[
                    pl.BlockSpec((bb, C, N), lambda b: (b, 0, 0)),
                    pl.BlockSpec((Cr, C), lambda b: (0, 0)),
                    pl.BlockSpec((C, Cr), lambda b: (0, 0)),
                ],
                out_specs=pl.BlockSpec((bb, C, N), lambda b: (b, 0, 0)),
            ),
            compiler_params=pltpu.CompilerParams(
                dimension_semantics=("parallel",),
                vmem_limit_bytes=vmem_limit),
            cost_estimate=cost,
        )(x_flat, w1, w2)
        return out_flat.reshape(B, C, H, W)

    # -------- two-pass fallback: (C, N) slab too big for one VMEM block --------
    if block_n is None:
        tn = max(128, ((target_blk // max(C * itemsize, 1)) // 128) * 128)
    else:
        tn = block_n
    if tn >= N:
        tn = N
    grid_n = pl.cdiv(N, tn)

    if block_b is None:
        bb = max(1, target_blk // max(C * tn * itemsize, 1))
        bb = min(bb, B)
        if B >= 2:
            bb = min(bb, pl.cdiv(B, 2))
    else:
        bb = min(block_b, B)
    grid_b = pl.cdiv(B, bb)

    blk_bytes = bb * C * tn * itemsize
    vmem_limit = int(min(vmem_cap, max(32 << 20, 4 * blk_bytes + (4 << 20))))

    # Pass 1: pooled sums / maxima, accumulated over the (inner) spatial grid axis.
    pooled3 = pl.pallas_call(
        functools.partial(_pool_kernel, mode=mode, tile_n=tn, n_valid=N),
        out_shape=jax.ShapeDtypeStruct((B, C, 1), jnp.float32),
        grid_spec=pltpu.PrefetchScalarGridSpec(
            num_scalar_prefetch=0,
            grid=(grid_b, grid_n),
            in_specs=[pl.BlockSpec((bb, C, tn), lambda b, n: (b, 0, n))],
            out_specs=pl.BlockSpec((bb, C, 1), lambda b, n: (b, 0, 0)),
        ),
        compiler_params=pltpu.CompilerParams(
            dimension_semantics=("parallel", "arbitrary"),
            vmem_limit_bytes=vmem_limit),
        cost_estimate=pl.CostEstimate(
            flops=int(B * C * N), transcendentals=0,
            bytes_accessed=int(B * C * N * itemsize)),
    )(x_flat)
    pooled = pooled3[:, :, 0]                              # (B, C) f32
    if mode == "avg":
        pooled = pooled / N

    # Tiny FC + sigmoid on the (B, C) vector: negligible work, plain JAX.
    hidden = jnp.maximum(
        jax.lax.dot_general(pooled.astype(w1.dtype), w1,
                            dimension_numbers=(((1,), (1,)), ((), ())),
                            preferred_element_type=jnp.float32), 0.0)
    scale = jax.nn.sigmoid(
        jax.lax.dot_general(hidden.astype(w2.dtype), w2,
                            dimension_numbers=(((1,), (1,)), ((), ())),
                            preferred_element_type=jnp.float32))
    scale = scale.astype(x.dtype).reshape(B, C, 1)

    # Pass 2: apply the gate tile-by-tile.
    out_flat = pl.pallas_call(
        _scale_kernel,
        out_shape=jax.ShapeDtypeStruct((B, C, N), x.dtype),
        grid_spec=pltpu.PrefetchScalarGridSpec(
            num_scalar_prefetch=0,
            grid=(grid_b, grid_n),
            in_specs=[
                pl.BlockSpec((bb, C, tn), lambda b, n: (b, 0, n)),
                pl.BlockSpec((bb, C, 1), lambda b, n: (b, 0, 0)),
            ],
            out_specs=pl.BlockSpec((bb, C, tn), lambda b, n: (b, 0, n)),
        ),
        compiler_params=pltpu.CompilerParams(
            dimension_semantics=("parallel", "parallel"),
            vmem_limit_bytes=vmem_limit),
        cost_estimate=pl.CostEstimate(
            flops=int(B * C * N), transcendentals=0,
            bytes_accessed=int(2 * B * C * N * itemsize)),
    )(x_flat, scale)
    return out_flat.reshape(B, C, H, W)


# ---------------------------------------------------------------------------
# Pure-JAX reference (mirrors PyTorch SEBlock.forward)
# ---------------------------------------------------------------------------
def se_block_reference(x, w1, w2, *, mode="avg"):
    if mode == "avg":
        v = jnp.mean(x, axis=(2, 3))
    else:
        v = jnp.max(x, axis=(2, 3))
    h = jnp.maximum(v @ w1.T, 0.0)
    s = jax.nn.sigmoid(h @ w2.T)
    return x * s[:, :, None, None]


if __name__ == "__main__":
    root = jax.random.PRNGKey(0)

    def make_inputs(key, B, C, H, W, ratio):
        Cr = max(1, C // ratio)
        kx, k1, k2 = jax.random.split(key, 3)
        x = jax.random.normal(kx, (B, C, H, W), dtype=jnp.float32)
        # nn.Linear default init: U(-1/sqrt(fan_in), 1/sqrt(fan_in)).
        w1 = jax.random.uniform(k1, (Cr, C), dtype=jnp.float32,
                                minval=-1.0 / (C ** 0.5), maxval=1.0 / (C ** 0.5))
        w2 = jax.random.uniform(k2, (C, Cr), dtype=jnp.float32,
                                minval=-1.0 / (Cr ** 0.5), maxval=1.0 / (Cr ** 0.5))
        return x, w1, w2

    def check(x, w1, w2, mode, **kw):
        out = jax.block_until_ready(se_block_forward(x, w1, w2, mode=mode, **kw))
        ref = se_block_reference(x, w1, w2, mode=mode)
        return bool(jnp.allclose(out, ref, atol=1e-5, rtol=1e-5))

    keys = jax.random.split(root, 3)
    ok = True

    # 1) Main single-pass path, lane-dense spatial (16x16 -> N=256).
    x, w1, w2 = make_inputs(keys[0], 2, 4, 16, 16, 2)
    for mode in ("avg", "max"):
        ok &= check(x, w1, w2, mode)

    # 2) Odd spatial size (7x7 -> N=49) + partial batch block (B=3, block_b=2):
    #    verifies Mosaic's padded-lane handling for sum/max and cdiv batch tiling.
    x, w1, w2 = make_inputs(keys[1], 3, 8, 7, 7, 4)
    for mode in ("avg", "max"):
        ok &= check(x, w1, w2, mode, block_b=2)

    # 3) Two-pass fallback with a partial spatial tile (N=200, tile_n=128):
    #    exercises the masked pool accumulation and tiled scale pass.
    x, w1, w2 = make_inputs(keys[2], 2, 8, 10, 20, 2)
    for mode in ("avg", "max"):
        ok &= check(x, w1, w2, mode, force_two_pass=True, block_b=1, block_n=128)

    assert ok
    print("KERNEL_OK")
</pallas_src>

<mosaic_0001>
module attributes {stable_mosaic.version = 11 : i64} {
  func.func @_se_kernel(%arg0: i32, %arg1: memref<1x4x256xf32, #tpu.memory_space<vmem>>, %arg2: memref<2x4xf32, #tpu.memory_space<vmem>>, %arg3: memref<4x2xf32, #tpu.memory_space<vmem>>, %arg4: memref<1x4x256xf32, #tpu.memory_space<vmem>>) attributes {dimension_semantics = [#tpu.dimension_semantics<parallel>], iteration_bounds = array<i64: 2>, scalar_prefetch = 0 : i64, scratch_operands = 0 : i64, tpu.core_type = #tpu.core_type<tc>, window_params = [{transform_indices = @transform_0, window_bounds = array<i64: 1, 4, 256>}, {pipeline_mode = #tpu.pipeline_mode<synchronous>, transform_indices = @transform_1, window_bounds = array<i64: 2, 4>}, {pipeline_mode = #tpu.pipeline_mode<synchronous>, transform_indices = @transform_2, window_bounds = array<i64: 4, 2>}, {transform_indices = @transform_3, window_bounds = array<i64: 1, 4, 256>}]} {
    %c0 = arith.constant 0 : index
    %c0_0 = arith.constant 0 : index
    %c0_1 = arith.constant 0 : index
    %0 = vector.load %arg1[%c0, %c0_0, %c0_1] : memref<1x4x256xf32, #tpu.memory_space<vmem>>, vector<1x4x256xf32>
    %cst = arith.constant dense<0.000000e+00> : vector<1x4xf32>
    %1 = vector.multi_reduction <add>, %0, %cst [2] : vector<1x4x256xf32> to vector<1x4xf32>
    %cst_2 = arith.constant 3.906250e-03 : f32
    %2 = vector.broadcast %cst_2 : f32 to vector<1x4xf32>
    %3 = arith.mulf %1, %2 : vector<1x4xf32>
    %c0_3 = arith.constant 0 : index
    %c0_4 = arith.constant 0 : index
    %4 = vector.load %arg2[%c0_3, %c0_4] : memref<2x4xf32, #tpu.memory_space<vmem>>, vector<2x4xf32>
    %c0_5 = arith.constant 0 : index
    %c0_6 = arith.constant 0 : index
    %5 = vector.load %arg3[%c0_5, %c0_6] : memref<4x2xf32, #tpu.memory_space<vmem>>, vector<4x2xf32>
    %cst_7 = arith.constant dense<0.000000e+00> : vector<1x2xf32>
    %6 = tpu.matmul %3, %4, %cst_7 {dimension_numbers = #tpu.dot_dimension_numbers<[1], [1], [0], [0], [0, 0, 1, 0], [], []>} : vector<1x4xf32>, vector<2x4xf32>, vector<1x2xf32> -> vector<1x2xf32>
    %cst_8 = arith.constant 0.000000e+00 : f32
    %7 = vector.broadcast %cst_8 : f32 to vector<1x2xf32>
    %8 = arith.maximumf %6, %7 : vector<1x2xf32>
    %cst_9 = arith.constant dense<0.000000e+00> : vector<1x4xf32>
    %9 = tpu.matmul %8, %5, %cst_9 {dimension_numbers = #tpu.dot_dimension_numbers<[1], [1], [0], [0], [0, 0, 1, 0], [], []>} : vector<1x2xf32>, vector<4x2xf32>, vector<1x4xf32> -> vector<1x4xf32>
    %10 = arith.negf %9 : vector<1x4xf32>
    %11 = math.exp %10 : vector<1x4xf32>
    %cst_10 = arith.constant 1.000000e+00 : f32
    %12 = vector.broadcast %cst_10 : f32 to vector<1x4xf32>
    %13 = arith.addf %12, %11 : vector<1x4xf32>
    %14 = arith.divf %12, %13 : vector<1x4xf32>
    %15 = vector.shape_cast %14 : vector<1x4xf32> to vector<1x4x1xf32>
    %16 = vector.broadcast %15 : vector<1x4x1xf32> to vector<1x4x256xf32>
    %17 = arith.mulf %0, %16 : vector<1x4x256xf32>
    %c0_11 = arith.constant 0 : index
    %c0_12 = arith.constant 0 : index
    %c0_13 = arith.constant 0 : index
    %18 = vector.load %arg4[%c0_11, %c0_12, %c0_13] : memref<1x4x256xf32, #tpu.memory_space<vmem>>, vector<1x4x256xf32>
    tpu.vector_store %arg4[%c0_11, %c0_12, %c0_13], %17 {strides = array<i32>} : memref<1x4x256xf32, #tpu.memory_space<vmem>>, vector<1x4x256xf32>,
    return
  }
  func.func @transform_0(%arg0: i32) -> (i32, i32, i32) {
    %c0_i32 = arith.constant 0 : i32
    %c0_i32_0 = arith.constant 0 : i32
    %c0_i32_1 = arith.constant 0 : i32
    return %arg0, %c0_i32, %c0_i32_0 : i32, i32, i32
  }
  func.func @transform_1(%arg0: i32) -> (i32, i32) {
    %c0_i32 = arith.constant 0 : i32
    %c0_i32_0 = arith.constant 0 : i32
    %c0_i32_1 = arith.constant 0 : i32
    return %c0_i32, %c0_i32_0 : i32, i32
  }
  func.func @transform_2(%arg0: i32) -> (i32, i32) {
    %c0_i32 = arith.constant 0 : i32
    %c0_i32_0 = arith.constant 0 : i32
    %c0_i32_1 = arith.constant 0 : i32
    return %c0_i32, %c0_i32_0 : i32, i32
  }
  func.func @transform_3(%arg0: i32) -> (i32, i32, i32) {
    %c0_i32 = arith.constant 0 : i32
    %c0_i32_0 = arith.constant 0 : i32
    %c0_i32_1 = arith.constant 0 : i32
    return %arg0, %c0_i32, %c0_i32_0 : i32, i32, i32
  }
}

</mosaic_0001>

<llo_original>
// kernel: tpu_custom_call.1
$region0: #{tpu_custom_call.1}
  #allocation0 [shape = 'u32[]', space=smem, size = 0x4, offset = 0x4, fixed_abs, tag = 'smem constant byte address 0x4 - core index']
  #allocation1 [shape = 'u32[144,128]{1,0:T(1,128)}', space=vmem, size = 0x12000, scoped, tag = 'internal scratch']
  %s0 = inlined_call_operand.hbm [shape: f32[2,4,256], index: 0, kind: input, shape index: {}]
  %s1 = inlined_call_operand.vmem [shape: f32[2,4], index: 1, kind: input, shape index: {}]
  %s2 = inlined_call_operand.vmem [shape: f32[4,2], index: 2, kind: input, shape index: {}]
  %s3 = inlined_call_operand.hbm [shape: f32[2,4,256], index: 3, kind: output, shape index: {}]
  %s4 = sld [smem:[#allocation0]]
  $region49: #{tpu_custom_call.1} parent=0
    _
  %s6 = ssub.s32 1, %s4
  %s7 = scalar_select 0, %s6, %s4
  $region1: #{tpu_custom_call.1} parent=0
    #allocation2 [shape = 'u8[8192]{0}', space=vmem, size = 0x2000, scoped, tag = 'input window, operand 0']
    #allocation3 [shape = 's32[2]{0}', space=sflag, size = 0x8, scoped, tag = 'scoped memory for tpu_custom_call.1']
    #allocation4 [shape = 's32[2]{0}', space=sflag, size = 0x8, scoped, tag = 'scoped memory for tpu_custom_call.1']
    #allocation5 [shape = 'u8[8192]{0}', space=vmem, size = 0x2000, scoped, tag = 'output window, operand 0']
    %8 = vsyncpa [#allocation3], 0
    %s9 = scalar_lea.sflag [#allocation3], 1
    %10 = vsyncpa %s9, 0
    %11 = vsyncpa [#allocation4], 0
    %s12 = scalar_lea.sflag [#allocation4], 1
    %13 = vsyncpa %s12, 0
    loop: start=0, step=1, limit=4
    $region2: #{tpu_custom_call.1} parent=1 // loop_pre_header
      _
    $region3: #{tpu_custom_call.1} parent=1 // loop_header
      %s15 = sphi 0, %s19
      %p16 = scmp.ge.s32.totalorder %s15, 4
      %s25 = sphi 0, %s27
      %s28 = sphi 0, %s25
      %s29 = sphi 0, %s28
      %s45 = sphi 0, %s29
      %s49 = sphi 0, %s49
      %s51 = sphi 0, %s49
      %s52 = sphi 0, %s51
      %s66 = sphi 0, %s52
      %s70 = sphi 0, %s70
      %s72 = sphi 0, %s70
      %s73 = sphi 0, %s72
      %s87 = sphi 0, %s73
      %s93 = sphi 0, %s95
      %s96 = sphi 0, %s93
      %s97 = sphi 0, %s96
      %s113 = sphi 0, %s97
    $region4: #{tpu_custom_call.1} parent=1 // loop_header_branch
      %18 = sbr.rel (%p16) target = $region8
    $region5: #{tpu_custom_call.1} parent=1 // loop_body
      %s20 = ssub.s32 %s15, 1
      %s21 = ssub.s32 %s15, 2
      %s22 = sadd.s32 %s15, 1
      %s23 = ssub.s32 %s15, %s22
      %p24 = scmp.eq.s32.totalorder %s23, 0
      %s26 = sadd.s32 %s25, 1
      %s27 = scalar_select %p24, %s25, %s26
      %p30 = pneg %p24
      %p31 = scmp.eq.s32.totalorder %s15, 1
      %p32 = por %p30, %p31
      %p33 = scmp.ne.s32.totalorder %s25, %s28
      %p34 = scmp.eq.s32.totalorder %s15, 0
      %p35 = por %p33, %p34
      %p36 = scmp.ne.s32.totalorder %s25, %s28
      %p37 = scmp.eq.s32.totalorder %s20, 1
      %p38 = por %p36, %p37
      %p39 = scmp.ne.s32.totalorder %s28, %s29
      %p40 = scmp.eq.s32.totalorder %s20, 0
      %p41 = por %p39, %p40
      %p42 = scmp.ne.s32.totalorder %s28, %s29
      %p43 = scmp.eq.s32.totalorder %s21, 1
      %p44 = por %p42, %p43
      %p46 = scmp.ne.s32.totalorder %s29, %s45
      %p47 = scmp.eq.s32.totalorder %s21, 0
      %p48 = por %p46, %p47
      %s50 = sadd.s32 %s49, 1
      %p53 = scmp.eq.s32.totalorder %s15, 1
      %p54 = scmp.ne.s32.totalorder %s49, %s51
      %p55 = scmp.eq.s32.totalorder %s15, 0
      %p56 = por %p54, %p55
      %p57 = scmp.ne.s32.totalorder %s49, %s51
      %p58 = scmp.eq.s32.totalorder %s20, 1
      %p59 = por %p57, %p58
      %p60 = scmp.ne.s32.totalorder %s51, %s52
      %p61 = scmp.eq.s32.totalorder %s20, 0
      %p62 = por %p60, %p61
      %p63 = scmp.ne.s32.totalorder %s51, %s52
      %p64 = scmp.eq.s32.totalorder %s21, 1
      %p65 = por %p63, %p64
      %p67 = scmp.ne.s32.totalorder %s52, %s66
      %p68 = scmp.eq.s32.totalorder %s21, 0
      %p69 = por %p67, %p68
      %s71 = sadd.s32 %s70, 1
      %p74 = scmp.eq.s32.totalorder %s15, 1
      %p75 = scmp.ne.s32.totalorder %s70, %s72
      %p76 = scmp.eq.s32.totalorder %s15, 0
      %p77 = por %p75, %p76
      %p78 = scmp.ne.s32.totalorder %s70, %s72
      %p79 = scmp.eq.s32.totalorder %s20, 1
      %p80 = por %p78, %p79
      %p81 = scmp.ne.s32.totalorder %s72, %s73
      %p82 = scmp.eq.s32.totalorder %s20, 0
      %p83 = por %p81, %p82
      %p84 = scmp.ne.s32.totalorder %s72, %s73
      %p85 = scmp.eq.s32.totalorder %s21, 1
      %p86 = por %p84, %p85
      %p88 = scmp.ne.s32.totalorder %s73, %s87
      %p89 = scmp.eq.s32.totalorder %s21, 0
      %p90 = por %p88, %p89
      %s91 = ssub.s32 %s15, %s22
      %p92 = scmp.eq.s32.totalorder %s91, 0
      %s94 = sadd.s32 %s93, 1
      %s95 = scalar_select %p92, %s93, %s94
      %p98 = pneg %p92
      %p99 = scmp.eq.s32.totalorder %s15, 1
      %p100 = por %p98, %p99
      %p101 = scmp.ne.s32.totalorder %s93, %s96
      %p102 = scmp.eq.s32.totalorder %s15, 0
      %p103 = por %p101, %p102
      %p104 = scmp.ne.s32.totalorder %s93, %s96
      %p105 = scmp.eq.s32.totalorder %s20, 1
      %p106 = por %p104, %p105
      %p107 = scmp.ne.s32.totalorder %s96, %s97
      %p108 = scmp.eq.s32.totalorder %s20, 0
      %p109 = por %p107, %p108
      %p110 = scmp.ne.s32.totalorder %s96, %s97
      %p111 = scmp.eq.s32.totalorder %s21, 1
      %p112 = por %p110, %p111
      %p114 = scmp.ne.s32.totalorder %s97, %s113
      %p115 = scmp.eq.s32.totalorder %s21, 0
      %p116 = por %p114, %p115
      %p117 = scmp.le.s32.totalorder 1, %s15
      %p118 = scmp.lt.s32.totalorder %s15, 3
      %p119 = pnand %p117, %p118
      %p120 = pneg %p119
      // Predicated region
      $region9: #{tpu_custom_call.1} parent=5 // pred_check
        _
      $region10: #{tpu_custom_call.1} parent=5 // pred_check_branch
        %122 = sbr.rel (%p119) target = $region12
      $region11: #{tpu_custom_call.1} parent=5 // pred_region
        %s123 = ssub.s32 %s15, 1
        // Predicated region
        $region13: #{tpu_custom_call.1} parent=11 // pred_check
          %p124 = pneg %p62
        $region14: #{tpu_custom_call.1} parent=11 // pred_check_branch
          %126 = sbr.rel (%p124) target = $region16
        $region15: #{tpu_custom_call.1} parent=11 // pred_region
          _
        $region16: #{tpu_custom_call.1} parent=11 // pred_fallthru
          _
        // Predicated region
        $region17: #{tpu_custom_call.1} parent=11 // pred_check
          %p127 = pneg %p83
        $region18: #{tpu_custom_call.1} parent=11 // pred_check_branch
          %129 = sbr.rel (%p127) target = $region20
        $region19: #{tpu_custom_call.1} parent=11 // pred_region
          _
        $region20: #{tpu_custom_call.1} parent=11 // pred_fallthru
          _
      $region12: #{tpu_custom_call.1} parent=5 // pred_fallthru
        _
      %p130 = scmp.lt.s32.totalorder %s15, 2
      // Predicated region
      $region21: #{tpu_custom_call.1} parent=5 // pred_check
        %p131 = pneg %p130
      $region22: #{tpu_custom_call.1} parent=5 // pred_check_branch
        %133 = sbr.rel (%p131) target = $region24
      $region23: #{tpu_custom_call.1} parent=5 // pred_region
        // Predicated region
        $region25: #{tpu_custom_call.1} parent=23 // pred_check
          %p134 = pneg %p35
        $region26: #{tpu_custom_call.1} parent=23 // pred_check_branch
          %136 = sbr.rel (%p134) target = $region28
        $region27: #{tpu_custom_call.1} parent=23 // pred_region
          %s137 = sand.u32 %s25, 1
          %s138 = scalar_lea.sflag [#allocation3], %s137
          %s139 = sand.u32 %s25, 1
          %s140 = smul.addr %s139, 8
          %s141 = scalar_lea.vmem [#allocation2], %s140
          %s143 = ssub.s32 128, 128
          %144 = vsyncadd %s138, %s143
          %s145 = smul.addr %s15, 2
          %s146 = smul.addr %s145, 64
          %s147 = scalar_lea.hbm %s0, %s146
          %s149 = sshll.u32 %s141, 4
          %s150 = int_to_ptr.vmem [resolvable:$true] %s149
          %152 = dma.hbm_to_vmem [thread:$0]  %s147, 128, %s150, %s138
        $region28: #{tpu_custom_call.1} parent=23 // pred_fallthru
          _
      $region24: #{tpu_custom_call.1} parent=5 // pred_fallthru
        _
      %p153 = scmp.le.s32.totalorder 1, %s15
      %p154 = scmp.lt.s32.totalorder %s15, 3
      %p155 = pnand %p153, %p154
      %p156 = pneg %p155
      // Predicated region
      $region29: #{tpu_custom_call.1} parent=5 // pred_check
        _
      $region30: #{tpu_custom_call.1} parent=5 // pred_check_branch
        %158 = sbr.rel (%p155) target = $region32
      $region31: #{tpu_custom_call.1} parent=5 // pred_region
        %s159 = ssub.s32 %s15, 1
        %s160 = sand.u32 %s28, 1
        %s161 = scalar_lea.sflag [#allocation3], %s160
        %s162 = sand.u32 %s28, 1
        %s163 = smul.addr %s162, 8
        %s164 = scalar_lea.vmem [#allocation2], %s163
        // Predicated region
        $region33: #{tpu_custom_call.1} parent=31 // pred_check
          %p165 = pneg %p41
        $region34: #{tpu_custom_call.1} parent=31 // pred_check_branch
          %167 = sbr.rel (%p165) target = $region36
        $region35: #{tpu_custom_call.1} parent=31 // pred_region
          %168 = dma.done %s161, 128
        $region36: #{tpu_custom_call.1} parent=31 // pred_fallthru
          _
        %s169 = sand.u32 %s28, 1
        %s170 = scalar_lea.sflag [#allocation3], %s169
        %s171 = sand.u32 %s28, 1
        %s172 = smul.addr %s171, 8
        %s173 = scalar_lea.vmem [#allocation2], %s172
        %p174 = pneg %p41
        %p175 = pneg %p38
        %p176 = pneg %p62
        %p177 = pneg %p59
        %p178 = pneg %p83
        %p179 = pneg %p80
        %p180 = pneg %p109
        %p181 = pneg %p106
        %s182 = sand.u32 %s96, 1
        %s183 = scalar_lea.sflag [#allocation4], %s182
        %s184 = sand.u32 %s96, 1
        %s185 = smul.addr %s184, 8
        %s186 = scalar_lea.vmem [#allocation5], %s185
        %v187 = vld [vmem:[%s164] sm:$0xff]
        %v189 = vcombine.high %v187, %v187
        %vm191 = vcmask 1043456
        %v192 = vsel %vm191, %v187, 0.0
        %v193 = vsel %vm191, %v189, 0.0
        %v194 = vadd.f32 %v192, %v193
        %195 = vadd.xlane.f32.xlu0 %v194
        %v196 = vpop.xlane.xlu0 %195
        %v197 = vmul.f32 %v196, 0.00390625
        %v198 = vld [vmem:[%s1] sm:$0x3]
        %v199 = vld [vmem:[%s2] sm:$0xf]
        %v201 = vlaneseq
        %v202 = vand.u32 %v201, 127
        %v203 = vlaneseq
        %v204 = vshrl.u32 %v203, 7
        %v205 = vsub.s32 %v202, %v204
        %v206 = vrot.slane %v197, %v205
        %vm207 = vcmask 31744
        %v208 = vsel %vm207, %v206, 0
        %v211 = vsel %vm207, %v198, 0
        %213 = vmatprep.subr.mxu0 0.0
        %214 = vmatpush1.xpose.msra.mxu0 %v211
        %215 = vmatprep.subr.mxu0 0.0
        %216 = vmatpush1.xpose.msra.mxu0 0.0
        %217 = vmatprep.subr.mxu0 0.0
        %218 = vmatpush1.xpose.msra.mxu0 0.0
        %219 = vmatprep.subr.mxu0 0.0
        %220 = vmatpush1.xpose.msra.mxu0 0.0
        %221 = vmatprep.subr.mxu0 0.0
        %222 = vmatpush1.xpose.msra.mxu0 0.0
        %223 = vmatprep.subr.mxu0 0.0
        %224 = vmatpush1.xpose.msra.mxu0 0.0
        %225 = vmatprep.subr.mxu0 0.0
        %226 = vmatpush1.xpose.msra.mxu0 0.0
        %227 = vmatprep.subr.mxu0 0.0
        %228 = vmatpush1.xpose.msra.mxu0 0.0
        %229 = vmatprep.subr.mxu0 0.0
        %230 = vmatpush1.xpose.msra.mxu0 0.0
        %231 = vmatprep.subr.mxu0 0.0
        %232 = vmatpush1.xpose.msra.mxu0 0.0
        %233 = vmatprep.subr.mxu0 0.0
        %234 = vmatpush1.xpose.msra.mxu0 0.0
        %235 = vmatprep.subr.mxu0 0.0
        %236 = vmatpush1.xpose.msra.mxu0 0.0
        %237 = vmatprep.subr.mxu0 0.0
        %238 = vmatpush1.xpose.msra.mxu0 0.0
        %239 = vmatprep.subr.mxu0 0.0
        %240 = vmatpush1.xpose.msra.mxu0 0.0
        %241 = vmatprep.subr.mxu0 0.0
        %242 = vmatpush1.xpose.msra.mxu0 0.0
        %243 = vmatprep.subr.mxu0 0.0
        %244 = vmatpush1.xpose.msra.mxu0 0.0
        %245 = vmatprep.subr.mxu0 0.0
        %246 = vmatpush1.xpose.msra.mxu0 0.0
        %247 = vmatprep.subr.mxu0 0.0
        %248 = vmatpush1.xpose.msra.mxu0 0.0
        %249 = vmatprep.subr.mxu0 0.0
        %250 = vmatpush1.xpose.msra.mxu0 0.0
        %251 = vmatprep.subr.mxu0 0.0
        %252 = vmatpush1.xpose.msra.mxu0 0.0
        %253 = vmatprep.subr.mxu0 0.0
        %254 = vmatpush1.xpose.msra.mxu0 0.0
        %255 = vmatprep.subr.mxu0 0.0
        %256 = vmatpush1.xpose.msra.mxu0 0.0
        %257 = vmatprep.subr.mxu0 0.0
        %258 = vmatpush1.xpose.msra.mxu0 0.0
        %259 = vmatprep.subr.mxu0 0.0
        %260 = vmatpush1.xpose.msra.mxu0 0.0
        %261 = vmatprep.subr.mxu0 0.0
        %262 = vmatpush1.xpose.msra.mxu0 0.0
        %263 = vmatprep.subr.mxu0 0.0
        %264 = vmatpush1.xpose.msra.mxu0 0.0
        %265 = vmatprep.subr.mxu0 0.0
        %266 = vmatpush1.xpose.msra.mxu0 0.0
        %267 = vmatprep.subr.mxu0 0.0
        %268 = vmatpush1.xpose.msra.mxu0 0.0
        %269 = vmatprep.subr.mxu0 0.0
        %270 = vmatpush1.xpose.msra.mxu0 0.0
        %271 = vmatprep.subr.mxu0 0.0
        %272 = vmatpush1.xpose.msra.mxu0 0.0
        %273 = vmatprep.subr.mxu0 0.0
        %274 = vmatpush1.xpose.msra.mxu0 0.0
        %275 = vmatprep.subr.mxu0 0.0
        %276 = vmatpush1.xpose.msra.mxu0 0.0
        %277 = vmatprep.mubr.f32.mxu0 0.0
        %278 = vmatmul.mubr.f32.gmra.mrb[0].mxu0 %v208
        %v279 = vpop.f32.mrb[0].mxu0
        %v280 = vadd.f32 0.0, %v279
        %v281 = vpop.f32.mrb[0].mxu0
        %282 = vdwg.mxu0
        %v283 = vmax.f32 %v280, 0.0
        %vm284 = vcmask 15360
        %v286 = vsel %vm284, %v283, 0
        %v289 = vsel %vm284, %v199, 0
        %291 = vmatprep.subr.mxu0 0.0
        %292 = vmatpush1.xpose.msra.mxu0 %v289
        %293 = vmatprep.subr.mxu0 0.0
        %294 = vmatpush1.xpose.msra.mxu0 0.0
        %295 = vmatprep.subr.mxu0 0.0
        %296 = vmatpush1.xpose.msra.mxu0 0.0
        %297 = vmatprep.subr.mxu0 0.0
        %298 = vmatpush1.xpose.msra.mxu0 0.0
        %299 = vmatprep.subr.mxu0 0.0
        %300 = vmatpush1.xpose.msra.mxu0 0.0
        %301 = vmatprep.subr.mxu0 0.0
        %302 = vmatpush1.xpose.msra.mxu0 0.0
        %303 = vmatprep.subr.mxu0 0.0
        %304 = vmatpush1.xpose.msra.mxu0 0.0
        %305 = vmatprep.subr.mxu0 0.0
        %306 = vmatpush1.xpose.msra.mxu0 0.0
        %307 = vmatprep.subr.mxu0 0.0
        %308 = vmatpush1.xpose.msra.mxu0 0.0
        %309 = vmatprep.subr.mxu0 0.0
        %310 = vmatpush1.xpose.msra.mxu0 0.0
        %311 = vmatprep.subr.mxu0 0.0
        %312 = vmatpush1.xpose.msra.mxu0 0.0
        %313 = vmatprep.subr.mxu0 0.0
        %314 = vmatpush1.xpose.msra.mxu0 0.0
        %315 = vmatprep.subr.mxu0 0.0
        %316 = vmatpush1.xpose.msra.mxu0 0.0
        %317 = vmatprep.subr.mxu0 0.0
        %318 = vmatpush1.xpose.msra.mxu0 0.0
        %319 = vmatprep.subr.mxu0 0.0
        %320 = vmatpush1.xpose.msra.mxu0 0.0
        %321 = vmatprep.subr.mxu0 0.0
        %322 = vmatpush1.xpose.msra.mxu0 0.0
        %323 = vmatprep.subr.mxu0 0.0
        %324 = vmatpush1.xpose.msra.mxu0 0.0
        %325 = vmatprep.subr.mxu0 0.0
        %326 = vmatpush1.xpose.msra.mxu0 0.0
        %327 = vmatprep.subr.mxu0 0.0
        %328 = vmatpush1.xpose.msra.mxu0 0.0
        %329 = vmatprep.subr.mxu0 0.0
        %330 = vmatpush1.xpose.msra.mxu0 0.0
        %331 = vmatprep.subr.mxu0 0.0
        %332 = vmatpush1.xpose.msra.mxu0 0.0
        %333 = vmatprep.subr.mxu0 0.0
        %334 = vmatpush1.xpose.msra.mxu0 0.0
        %335 = vmatprep.subr.mxu0 0.0
        %336 = vmatpush1.xpose.msra.mxu0 0.0
        %337 = vmatprep.subr.mxu0 0.0
        %338 = vmatpush1.xpose.msra.mxu0 0.0
        %339 = vmatprep.subr.mxu0 0.0
        %340 = vmatpush1.xpose.msra.mxu0 0.0
        %341 = vmatprep.subr.mxu0 0.0
        %342 = vmatpush1.xpose.msra.mxu0 0.0
        %343 = vmatprep.subr.mxu0 0.0
        %344 = vmatpush1.xpose.msra.mxu0 0.0
        %345 = vmatprep.subr.mxu0 0.0
        %346 = vmatpush1.xpose.msra.mxu0 0.0
        %347 = vmatprep.subr.mxu0 0.0
        %348 = vmatpush1.xpose.msra.mxu0 0.0
        %349 = vmatprep.subr.mxu0 0.0
        %350 = vmatpush1.xpose.msra.mxu0 0.0
        %351 = vmatprep.subr.mxu0 0.0
        %352 = vmatpush1.xpose.msra.mxu0 0.0
        %353 = vmatprep.subr.mxu0 0.0
        %354 = vmatpush1.xpose.msra.mxu0 0.0
        %355 = vmatprep.mubr.f32.mxu0 0.0
        %356 = vmatmul.mubr.f32.gmra.mrb[0].mxu0 %v286
        %v357 = vpop.f32.mrb[0].mxu0
        %v358 = vadd.f32 0.0, %v357
        %v359 = vpop.f32.mrb[0].mxu0
        %360 = vdwg.mxu0
        %v361 = vxor.u32 %v358, 2147483648
        %v362 = vmul.f32 %v361, 1.442695
        %v363 = vpow.pop %v362
        %v364 = vadd.f32 %v363, 1.0
        %v365 = vrcp.pop %v364
        %v366 = vmul.f32 1.0, %v365
        %v367 = vlaneseq
        %v368 = vshrl.u32 %v367, 7
        %v369 = vsub.s32 0, %v368
        %v370 = vrot.slane %v366, %v369
        %372 = vbcast.lane.b32.xlu0 %v370, 256
        %v373 = vpop.permute.xlu0 %372
        %v376 = vunpack.c.l.s4 839922192
        %v377 = vunpack.c.0.s8 %v376
        %v378 = vlaneseq
        %v379 = vshrl.u32 %v378, 7
        %v380 = vsub.s32 %v377, %v379
        %v381 = vrot.slane %v373, %v380
        %v383 = vmul.f32 %v187, %v381
        %384 = vst [vmem:[%s186] sm:$0xff] %v383
        %s385 = sand.u32 %s96, 1
        %s386 = scalar_lea.sflag [#allocation4], %s385
        %s387 = sand.u32 %s96, 1
        %s388 = smul.addr %s387, 8
        %s389 = scalar_lea.vmem [#allocation5], %s388
        // Predicated region
        $region37: #{tpu_custom_call.1} parent=31 // pred_check
          %p390 = pneg %p106
        $region38: #{tpu_custom_call.1} parent=31 // pred_check_branch
          %392 = sbr.rel (%p390) target = $region40
        $region39: #{tpu_custom_call.1} parent=31 // pred_region
          %s394 = ssub.s32 128, 128
          %395 = vsyncadd %s386, %s394
          %s396 = smul.addr %s20, 2
          %s397 = smul.addr %s396, 64
          %s398 = scalar_lea.hbm %s3, %s397
          %s400 = sshll.u32 %s389, 4
          %s401 = int_to_ptr.vmem [resolvable:$true] %s400
          %403 = dma.vmem_to_hbm [thread:$0]  %s401, 128, %s398, %s386
        $region40: #{tpu_custom_call.1} parent=31 // pred_fallthru
          _
      $region32: #{tpu_custom_call.1} parent=5 // pred_fallthru
        _
      %p404 = scmp.le.s32.totalorder 2, %s15
      // Predicated region
      $region41: #{tpu_custom_call.1} parent=5 // pred_check
        %p405 = pneg %p404
      $region42: #{tpu_custom_call.1} parent=5 // pred_check_branch
        %407 = sbr.rel (%p405) target = $region44
      $region43: #{tpu_custom_call.1} parent=5 // pred_region
        %s408 = ssub.s32 %s15, 2
        // Predicated region
        $region45: #{tpu_custom_call.1} parent=43 // pred_check
          %p409 = pneg %p112
        $region46: #{tpu_custom_call.1} parent=43 // pred_check_branch
          %411 = sbr.rel (%p409) target = $region48
        $region47: #{tpu_custom_call.1} parent=43 // pred_region
          %s412 = sand.u32 %s97, 1
          %s413 = scalar_lea.sflag [#allocation4], %s412
          %s414 = sand.u32 %s97, 1
          %s415 = smul.addr %s414, 8
          %s416 = scalar_lea.vmem [#allocation5], %s415
          %417 = dma.done %s413, 128
        $region48: #{tpu_custom_call.1} parent=43 // pred_fallthru
          _
      $region44: #{tpu_custom_call.1} parent=5 // pred_fallthru
        _
    $region6: #{tpu_custom_call.1} parent=1 // loop_footer
      %s19 = sadd.s32 1, %s15
    $region7: #{tpu_custom_call.1} parent=1 // loop_footer_branch
      %14 = sbr.rel target = $region3
    $region8: #{tpu_custom_call.1} parent=1 // loop_exit
      _
    %418 = vsyncpa [#allocation3], 1
    %s419 = scalar_lea.sflag [#allocation3], 1
    %420 = vsyncpa %s419, 1
    %421 = vsyncpa [#allocation4], 1
    %s422 = scalar_lea.sflag [#allocation4], 1
    %423 = vsyncpa %s422, 1

</llo_original>
